<compile_context>
chip_gen: v6e
topology: v6e:2x2x1
jax: 0.10.0
libtpu: 0.0.40
codegen_flags: <defaults>
</compile_context>

<pallas_src>
import functools

import jax
import jax.numpy as jnp
import numpy as np
from jax.experimental import pallas as pl
from jax.experimental.pallas import tpu as pltpu


# --------------------------------------------------------------------------
# Generation-aware VMEM budgets
# --------------------------------------------------------------------------
@functools.lru_cache(maxsize=None)
def _physical_vmem_bytes():
    try:
        info = pltpu.get_tpu_info()
        v = int(getattr(info, "vmem_capacity_bytes", 0))
        if v > 0:
            return v
    except Exception:
        pass
    return 128 << 20  # safe default (v5e/v6e class)


def _vmem_limit_bytes():
    # ~3/4 of physical, capped at 100 MiB: 96 MiB on 128 MiB chips, 48 MiB on v7x.
    return int(min((_physical_vmem_bytes() * 3) // 4, 100 << 20))


def _prefer_multistep():
    # Small-VMEM chips (v7x, 64 MiB) have 2 TensorCores sharing HBM: keep >= 2 steps
    # on a "parallel" grid axis so both cores get work.
    return _physical_vmem_bytes() <= (96 << 20)


_F32_TEMP_BYTES = 8  # ~2 live f32 temporaries per element inside the kernel


def _block_cost(elems, itemsize):
    # double-buffered input + output blocks at x dtype, plus f32 compute temporaries
    return elems * (4 * itemsize + _F32_TEMP_BYTES)


def _budget():
    return max(_vmem_limit_bytes() - (4 << 20), 1 << 20)


def _compiler_params(semantics):
    return pltpu.CompilerParams(dimension_semantics=semantics,
                                vmem_limit_bytes=_vmem_limit_bytes())


# --------------------------------------------------------------------------
# Tiling plans (static, trace-time Python)
# --------------------------------------------------------------------------
def _feature_tiles(c):
    """Candidate feature-tile widths, largest (most contiguous) first."""
    if c % 128 == 0:
        return [c] + [t for t in (2048, 1024, 512, 256, 128) if t < c and c % t == 0]
    # TODO(synk): pad C to a multiple of 128 for lane-dense stores when C % 128 != 0.
    return [c]


def _plan_fused(n, c, itemsize):
    """Feature tile for the single-pass (whole batch resident) path, or None."""
    tiles = _feature_tiles(c)
    if _prefer_multistep():
        multi = [t for t in tiles if c // t >= 2]
        tiles = multi + [t for t in tiles if t not in multi]
    for t in tiles:
        if _block_cost(n * t, itemsize) <= _budget():
            return t
    return None


def _divisors(n):
    out, i = set(), 1
    while i * i <= n:
        if n % i == 0:
            out.add(i)
            out.add(n // i)
        i += 1
    return sorted(out)


def _plan_rows(n, c, itemsize):
    """(tc, tn, n_pad) for the batch-tiled path (two-pass train and eval)."""
    budget = _budget()
    n_pad = ((n + 7) // 8) * 8
    for tc in _feature_tiles(c):          # full-row first: fully contiguous DMAs
        max_rows = budget // _block_cost(tc, itemsize)
        if max_rows < 8:
            continue
        best = 0
        for d in _divisors(n_pad):
            if d % 8 == 0 and d <= max_rows:
                best = max(best, d)
        if best:
            return tc, best, n_pad
    # last resort (enormous C); smallest tiles.
    return _feature_tiles(c)[-1], 8, n_pad


# --------------------------------------------------------------------------
# Kernels
# --------------------------------------------------------------------------
def _fused_train_kernel(x_ref, out_ref, sr_ref, *, inv_n):
    """Single pass: whole batch resident per feature tile."""
    x = x_ref[...].astype(jnp.float32)                         # (N, TC)
    m = jnp.sum(x, axis=0, keepdims=True) * inv_n               # (1, TC) per-feature mean
    cr = 2.0 * jnp.sqrt(jnp.maximum(m * (1.0 - m), 0.0))        # cos(rote)
    sr = 2.0 * m - 1.0                                          # sin(rote)
    c0 = 0.5 - 0.5 * cr
    s = jnp.sqrt(jnp.maximum(x - x * x, 0.0))                   # sqrt(x(1-x)), EUP
    out_ref[...] = (x * cr - s * sr + c0).astype(out_ref.dtype)
    sr_ref[...] = sr                                            # f32 row for running-rot glue


def _stats_kernel(x_ref, cr_ref, sr_ref, c0_ref, acc_ref, *, inv_n):
    """Pass A (two-pass path): column sums, finalized into CR/SR/C0 rows in-kernel."""
    i = pl.program_id(1)

    @pl.when(i == 0)
    def _():
        acc_ref[...] = jnp.zeros_like(acc_ref)

    acc_ref[...] += jnp.sum(x_ref[...].astype(jnp.float32), axis=0, keepdims=True)

    @pl.when(i == pl.num_programs(1) - 1)
    def _():
        m = acc_ref[...] * inv_n
        cr = 2.0 * jnp.sqrt(jnp.maximum(m * (1.0 - m), 0.0))
        cr_ref[...] = cr
        sr_ref[...] = 2.0 * m - 1.0
        c0_ref[...] = 0.5 - 0.5 * cr


def _apply_kernel(x_ref, cr_ref, sr_ref, c0_ref, out_ref):
    """out = x*CR - sqrt(max(x - x*x, 0))*SR + C0 (two-pass pass B and eval)."""
    x = x_ref[...].astype(jnp.float32)
    s = jnp.sqrt(jnp.maximum(x - x * x, 0.0))
    out_ref[...] = (x * cr_ref[...] - s * sr_ref[...] + c0_ref[...]).astype(out_ref.dtype)


# --------------------------------------------------------------------------
# pallas_call helpers
# --------------------------------------------------------------------------
def _fused_train(x, tc):
    n, c = x.shape
    return pl.pallas_call(
        functools.partial(_fused_train_kernel, inv_n=1.0 / float(n)),
        out_shape=(jax.ShapeDtypeStruct((n, c), x.dtype),
                   jax.ShapeDtypeStruct((1, c), jnp.float32)),
        grid=(c // tc,),
        in_specs=[pl.BlockSpec((n, tc), lambda j: (0, j))],
        out_specs=(pl.BlockSpec((n, tc), lambda j: (0, j)),
                   pl.BlockSpec((1, tc), lambda j: (0, j))),
        compiler_params=_compiler_params(("parallel",)),
    )(x)


def _stats(x_p, tc, tn, true_n):
    n_pad, c = x_p.shape
    # TODO(synk): on v7x, split the feature axis in two when C % 256 == 0 so the
    # reduction pass also uses both TensorCores.
    return pl.pallas_call(
        functools.partial(_stats_kernel, inv_n=1.0 / float(true_n)),
        out_shape=tuple(jax.ShapeDtypeStruct((1, c), jnp.float32) for _ in range(3)),
        grid=(c // tc, n_pad // tn),                 # reduction (batch) axis last
        in_specs=[pl.BlockSpec((tn, tc), lambda j, i: (i, j))],
        out_specs=tuple(pl.BlockSpec((1, tc), lambda j, i: (0, j)) for _ in range(3)),
        scratch_shapes=[pltpu.VMEM((1, tc), jnp.float32)],
        compiler_params=_compiler_params(("parallel", "arbitrary")),
    )(x_p)


def _apply(x_p, cr, sr, c0, tc, tn):
    n_pad, c = x_p.shape
    return pl.pallas_call(
        _apply_kernel,
        out_shape=jax.ShapeDtypeStruct((n_pad, c), x_p.dtype),
        grid=(c // tc, n_pad // tn),
        in_specs=[pl.BlockSpec((tn, tc), lambda j, i: (i, j)),
                  pl.BlockSpec((1, tc), lambda j, i: (0, j)),
                  pl.BlockSpec((1, tc), lambda j, i: (0, j)),
                  pl.BlockSpec((1, tc), lambda j, i: (0, j))],
        out_specs=pl.BlockSpec((tn, tc), lambda j, i: (i, j)),
        compiler_params=_compiler_params(("parallel", "parallel")),
    )(x_p, cr, sr, c0)


def _pad_rows(x, n_pad):
    n = x.shape[0]
    return x if n_pad == n else jnp.pad(x, ((0, n_pad - n), (0, 0)))


# --------------------------------------------------------------------------
# Public wrappers
# --------------------------------------------------------------------------
@functools.partial(jax.jit, static_argnames=("momentum", "force_two_pass"))
def qc_norm_correction_train(x, x_running_rot, momentum=0.1, force_two_pass=False):
    n, c = x.shape
    isz = jnp.dtype(x.dtype).itemsize
    tc_fused = None if force_two_pass else _plan_fused(n, c, isz)

    if tc_fused is not None:
        out, sr = _fused_train(x, tc_fused)
        sr_row = sr[0]                                          # (C,), f32, = 2m-1
    else:
        tc, tn, n_pad = _plan_rows(n, c, isz)
        x_p = _pad_rows(x, n_pad)                               # zero rows: mean uses true N
        cr, sr, c0 = _stats(x_p, tc, tn, n)
        out_p = _apply(x_p, cr, sr, c0, tc, tn)
        out = out_p if n_pad == n else out_p[:n]
        sr_row = sr[0]

    # Running-stat update: tiny (C,)-sized trig glue, f32.
    # pi/2 - acos(2m-1) == asin(2m-1) == asin(SR).
    x_moving_rot = jnp.arcsin(jnp.clip(sr_row, -1.0, 1.0))
    new_running = (momentum * x_running_rot.astype(jnp.float32)
                   + (1.0 - momentum) * x_moving_rot)
    return out, new_running.astype(x_running_rot.dtype)


@jax.jit
def qc_norm_correction_eval(x, x_running_rot):
    n, c = x.shape
    tc, tn, n_pad = _plan_rows(n, c, jnp.dtype(x.dtype).itemsize)
    r = x_running_rot.astype(jnp.float32)
    cr = jnp.cos(r)[None, :]                                    # (1, C) f32 glue
    sr = jnp.sin(r)[None, :]
    c0 = 0.5 - 0.5 * cr
    out_p = _apply(_pad_rows(x, n_pad), cr, sr, c0, tc, tn)
    return out_p if n_pad == n else out_p[:n]


# --------------------------------------------------------------------------
# Pure-JAX references (mirror the PyTorch module literally)
# --------------------------------------------------------------------------
def _ref_train(x, running_rot, momentum=0.1):
    xt = x.T                                                    # (C, N)
    x_sum = jnp.sum(xt, axis=-1, keepdims=True)
    x_mean = jnp.broadcast_to(x_sum / xt.shape[-1], xt.shape)
    x_mean_ancle = jnp.arccos(x_mean * 2.0 - 1.0)
    x_mean_rote = np.pi / 2 - x_mean_ancle
    x_moving_rot = jnp.sum(x_mean_rote, axis=-1) / xt.shape[-1]
    new_rot = momentum * running_rot + (1.0 - momentum) * x_moving_rot
    x_ancle = jnp.arccos(xt * 2.0 - 1.0)
    out = ((jnp.cos(x_ancle + x_mean_rote) + 1.0) / 2.0).T
    return out, new_rot


def _ref_eval(x, running_rot):
    xt = x.T
    x_ancle = jnp.arccos(xt * 2.0 - 1.0)
    return ((jnp.cos(x_ancle + running_rot[:, None]) + 1.0) / 2.0).T


# --------------------------------------------------------------------------
if __name__ == "__main__":
    key = jax.random.PRNGKey(0)
    k1, k2 = jax.random.split(key)
    momentum = 0.1

    # --- fused single-pass path ---
    n, c = 8, 256
    x = jax.random.uniform(k1, (n, c), dtype=jnp.float32)       # values in [0, 1]
    running = jnp.zeros((c,), dtype=jnp.float32)                # as in module __init__

    out, new_rot = qc_norm_correction_train(x, running, momentum=momentum)
    jax.block_until_ready((out, new_rot))
    ref_out, ref_rot = _ref_train(x, running, momentum)
    np.testing.assert_allclose(np.asarray(out), np.asarray(ref_out), rtol=1e-5, atol=1e-5)
    np.testing.assert_allclose(np.asarray(new_rot), np.asarray(ref_rot), rtol=1e-5, atol=1e-5)

    out_eval = jax.block_until_ready(qc_norm_correction_eval(x, new_rot))
    np.testing.assert_allclose(np.asarray(out_eval), np.asarray(_ref_eval(x, new_rot)),
                               rtol=1e-5, atol=1e-5)

    # --- two-pass (stats + apply) path with batch padding (N=20 -> padded to 24) ---
    n2, c2 = 20, 256
    x2 = jax.random.uniform(k2, (n2, c2), dtype=jnp.float32)
    running2 = jnp.zeros((c2,), dtype=jnp.float32)

    out2, rot2 = qc_norm_correction_train(x2, running2, momentum=momentum,
                                          force_two_pass=True)
    jax.block_until_ready((out2, rot2))
    ref_out2, ref_rot2 = _ref_train(x2, running2, momentum)
    np.testing.assert_allclose(np.asarray(out2), np.asarray(ref_out2), rtol=1e-5, atol=1e-5)
    np.testing.assert_allclose(np.asarray(rot2), np.asarray(ref_rot2), rtol=1e-5, atol=1e-5)

    out2_eval = jax.block_until_ready(qc_norm_correction_eval(x2, rot2))
    np.testing.assert_allclose(np.asarray(out2_eval), np.asarray(_ref_eval(x2, rot2)),
                               rtol=1e-5, atol=1e-5)

    print("KERNEL_OK")
</pallas_src>

<mosaic_0001>
module attributes {stable_mosaic.version = 11 : i64} {
  func.func @_fused_train_kernel(%arg0: i32, %arg1: memref<8x256xf32, #tpu.memory_space<vmem>>, %arg2: memref<8x256xf32, #tpu.memory_space<vmem>>, %arg3: memref<1x256xf32, #tpu.memory_space<vmem>>) attributes {dimension_semantics = [#tpu.dimension_semantics<parallel>], iteration_bounds = array<i64: 1>, scalar_prefetch = 0 : i64, scratch_operands = 0 : i64, tpu.core_type = #tpu.core_type<tc>, window_params = [{transform_indices = @transform_0, window_bounds = array<i64: 8, 256>}, {transform_indices = @transform_1, window_bounds = array<i64: 8, 256>}, {transform_indices = @transform_2, window_bounds = array<i64: 1, 256>}]} {
    %c0 = arith.constant 0 : index
    %c0_0 = arith.constant 0 : index
    %0 = vector.load %arg1[%c0, %c0_0] : memref<8x256xf32, #tpu.memory_space<vmem>>, vector<8x256xf32>
    %cst = arith.constant dense<0.000000e+00> : vector<256xf32>
    %1 = vector.multi_reduction <add>, %0, %cst [0] : vector<8x256xf32> to vector<256xf32>
    %2 = vector.shape_cast %1 : vector<256xf32> to vector<1x256xf32>
    %cst_1 = arith.constant 1.250000e-01 : f32
    %3 = vector.broadcast %cst_1 : f32 to vector<1x256xf32>
    %4 = arith.mulf %2, %3 : vector<1x256xf32>
    %cst_2 = arith.constant 1.000000e+00 : f32
    %5 = vector.broadcast %cst_2 : f32 to vector<1x256xf32>
    %6 = arith.subf %5, %4 : vector<1x256xf32>
    %7 = arith.mulf %4, %6 : vector<1x256xf32>
    %cst_3 = arith.constant 0.000000e+00 : f32
    %8 = vector.broadcast %cst_3 : f32 to vector<1x256xf32>
    %9 = arith.maximumf %7, %8 : vector<1x256xf32>
    %10 = math.sqrt %9 : vector<1x256xf32>
    %cst_4 = arith.constant 2.000000e+00 : f32
    %11 = vector.broadcast %cst_4 : f32 to vector<1x256xf32>
    %12 = arith.mulf %11, %10 : vector<1x256xf32>
    %cst_5 = arith.constant 2.000000e+00 : f32
    %13 = vector.broadcast %cst_5 : f32 to vector<1x256xf32>
    %14 = arith.mulf %13, %4 : vector<1x256xf32>
    %cst_6 = arith.constant 1.000000e+00 : f32
    %15 = vector.broadcast %cst_6 : f32 to vector<1x256xf32>
    %16 = arith.subf %14, %15 : vector<1x256xf32>
    %cst_7 = arith.constant 5.000000e-01 : f32
    %17 = vector.broadcast %cst_7 : f32 to vector<1x256xf32>
    %18 = arith.mulf %17, %12 : vector<1x256xf32>
    %cst_8 = arith.constant 5.000000e-01 : f32
    %19 = vector.broadcast %cst_8 : f32 to vector<1x256xf32>
    %20 = arith.subf %19, %18 : vector<1x256xf32>
    %21 = arith.mulf %0, %0 : vector<8x256xf32>
    %22 = arith.subf %0, %21 : vector<8x256xf32>
    %cst_9 = arith.constant 0.000000e+00 : f32
    %23 = vector.broadcast %cst_9 : f32 to vector<8x256xf32>
    %24 = arith.maximumf %22, %23 : vector<8x256xf32>
    %25 = math.sqrt %24 : vector<8x256xf32>
    %26 = vector.broadcast %12 : vector<1x256xf32> to vector<8x256xf32>
    %27 = arith.mulf %0, %26 : vector<8x256xf32>
    %28 = vector.broadcast %16 : vector<1x256xf32> to vector<8x256xf32>
    %29 = arith.mulf %25, %28 : vector<8x256xf32>
    %30 = arith.subf %27, %29 : vector<8x256xf32>
    %31 = vector.broadcast %20 : vector<1x256xf32> to vector<8x256xf32>
    %32 = arith.addf %30, %31 : vector<8x256xf32>
    %c0_10 = arith.constant 0 : index
    %c0_11 = arith.constant 0 : index
    %33 = vector.load %arg2[%c0_10, %c0_11] : memref<8x256xf32, #tpu.memory_space<vmem>>, vector<8x256xf32>
    tpu.vector_store %arg2[%c0_10, %c0_11], %32 {strides = array<i32>} : memref<8x256xf32, #tpu.memory_space<vmem>>, vector<8x256xf32>,
    %c0_12 = arith.constant 0 : index
    %c0_13 = arith.constant 0 : index
    %34 = vector.load %arg3[%c0_12, %c0_13] : memref<1x256xf32, #tpu.memory_space<vmem>>, vector<1x256xf32>
    tpu.vector_store %arg3[%c0_12, %c0_13], %16 {strides = array<i32>} : memref<1x256xf32, #tpu.memory_space<vmem>>, vector<1x256xf32>,
    return
  }
  func.func @transform_0(%arg0: i32) -> (i32, i32) {
    %c0_i32 = arith.constant 0 : i32
    %c0_i32_0 = arith.constant 0 : i32
    return %c0_i32, %arg0 : i32, i32
  }
  func.func @transform_1(%arg0: i32) -> (i32, i32) {
    %c0_i32 = arith.constant 0 : i32
    %c0_i32_0 = arith.constant 0 : i32
    return %c0_i32, %arg0 : i32, i32
  }
  func.func @transform_2(%arg0: i32) -> (i32, i32) {
    %c0_i32 = arith.constant 0 : i32
    %c0_i32_0 = arith.constant 0 : i32
    return %c0_i32, %arg0 : i32, i32
  }
}

</mosaic_0001>

<llo_original>
// kernel: qc_norm_correction_train.1
$region0: #{qc_norm_correction_train.1}
  #allocation0 [shape = 'u32[]', space=smem, size = 0x4, offset = 0x4, fixed_abs, tag = 'smem constant byte address 0x4 - core index']
  #allocation1 [shape = 'u32[144,128]{1,0:T(1,128)}', space=vmem, size = 0x12000, scoped, tag = 'internal scratch']
  %s0 = inlined_call_operand.hbm [shape: f32[8,256], index: 0, kind: input, shape index: {}]
  %s1 = inlined_call_operand.hbm [shape: f32[8,256], index: 1, kind: output, shape index: {0}]
  %s2 = inlined_call_operand.vmem [shape: f32[1,256], index: 2, kind: output, shape index: {1}]
  %3 = xla_tuple %s1, %s2
  %s4 = sld [smem:[#allocation0]]
  $region26: #{qc_norm_correction_train.1} parent=0
    _
  %s6 = ssub.s32 1, %s4
  %s7 = scalar_select 0, %s6, %s4
  $region1: #{qc_norm_correction_train.1} parent=0
    #allocation2 [shape = 'u8[8192]{0}', space=vmem, size = 0x2000, scoped, tag = 'input window, operand 0, single buffered']
    #allocation3 [shape = 's32[1]{0}', space=sflag, size = 0x4, scoped, tag = 'scoped memory for qc_norm_correction_train.1']
    #allocation4 [shape = 's32[1]{0}', space=sflag, size = 0x4, scoped, tag = 'scoped memory for qc_norm_correction_train.1']
    #allocation5 [shape = 'u8[8192]{0}', space=vmem, size = 0x2000, scoped, tag = 'output window, operand 0, single buffered']
    %8 = vsyncpa [#allocation3], 0
    %9 = vsyncpa [#allocation4], 0
    // Predicated region
    $region2: #{qc_norm_correction_train.1} parent=1 // pred_check
      _
    $region3: #{qc_norm_correction_train.1} parent=1 // pred_check_branch
      %11 = sbr.rel (0) target = $region5
    $region4: #{qc_norm_correction_train.1} parent=1 // pred_region
      %s13 = ssub.s32 256, 256
      %14 = vsyncadd [#allocation3], %s13
      %s16 = sshll.u32 [#allocation2], 4
      %s17 = int_to_ptr.vmem [resolvable:$true] %s16
      %19 = dma.hbm_to_vmem [thread:$0]  %s0, 256, %s17, [#allocation3]
    $region5: #{qc_norm_correction_train.1} parent=1 // pred_fallthru
      _
    // Predicated region
    $region6: #{qc_norm_correction_train.1} parent=1 // pred_check
      _
    $region7: #{qc_norm_correction_train.1} parent=1 // pred_check_branch
      %21 = sbr.rel (0) target = $region9
    $region8: #{qc_norm_correction_train.1} parent=1 // pred_region
      %22 = dma.done [#allocation3], 256
    $region9: #{qc_norm_correction_train.1} parent=1 // pred_fallthru
      _
    %v23 = vld [vmem:[#allocation2] sm:$0xff]
    %v24 = vld [vmem:[#allocation2 + $0x8] sm:$0xff]
    %v25 = vrot.slane %v23, 4
    %v26 = vadd.f32 %v23, %v25
    %v27 = vrot.slane %v26, 2
    %v28 = vadd.f32 %v26, %v27
    %v29 = vrot.slane %v28, 1
    %v30 = vadd.f32 %v28, %v29
    %v31 = vrot.slane %v24, 4
    %v32 = vadd.f32 %v24, %v31
    %v33 = vrot.slane %v32, 2
    %v34 = vadd.f32 %v32, %v33
    %v35 = vrot.slane %v34, 1
    %v36 = vadd.f32 %v34, %v35
    %v37 = vmul.f32 %v30, 0.125
    %v38 = vmul.f32 %v36, 0.125
    %v39 = vsub.f32 1.0, %v37
    %v40 = vsub.f32 1.0, %v38
    %v41 = vmul.f32 %v37, %v39
    %v42 = vmul.f32 %v38, %v40
    %v43 = vmax.f32 %v41, 0.0
    %v44 = vmax.f32 %v42, 0.0
    %v45 = vrsqrt.pop %v43
    %v46 = vmul.f32 %v43, %v45
    %vm47 = vcmp.eq.f32.partialorder %v43, inf
    %v48 = vsel %vm47, %v43, %v46
    %vm49 = vcmp.eq.f32.partialorder %v43, 0.0
    %v50 = vand.u32 %v43, 2147483648
    %v51 = vsel %vm49, %v50, %v48
    %v52 = vrsqrt.pop %v44
    %v53 = vmul.f32 %v44, %v52
    %vm54 = vcmp.eq.f32.partialorder %v44, inf
    %v55 = vsel %vm54, %v44, %v53
    %vm56 = vcmp.eq.f32.partialorder %v44, 0.0
    %v57 = vand.u32 %v44, 2147483648
    %v58 = vsel %vm56, %v57, %v55
    %v59 = vmul.f32 %v51, 2.0
    %v60 = vmul.f32 %v58, 2.0
    %v61 = vmul.f32 %v37, 2.0
    %v62 = vmul.f32 %v38, 2.0
    %v63 = vsub.f32 %v61, 1.0
    %v64 = vsub.f32 %v62, 1.0
    %v65 = vmul.f32 %v59, 0.5
    %v66 = vmul.f32 %v60, 0.5
    %v67 = vsub.f32 0.5, %v65
    %v68 = vsub.f32 0.5, %v66
    %v69 = vmul.f32 %v23, %v23
    %v70 = vmul.f32 %v24, %v24
    %v71 = vsub.f32 %v23, %v69
    %v72 = vsub.f32 %v24, %v70
    %v73 = vmax.f32 %v71, 0.0
    %v74 = vmax.f32 %v72, 0.0
    %v75 = vrsqrt.pop %v73
    %v76 = vmul.f32 %v73, %v75
    %vm77 = vcmp.eq.f32.partialorder %v73, inf
    %v78 = vsel %vm77, %v73, %v76
    %vm79 = vcmp.eq.f32.partialorder %v73, 0.0
    %v80 = vand.u32 %v73, 2147483648
    %v81 = vsel %vm79, %v80, %v78
    %v82 = vrsqrt.pop %v74
    %v83 = vmul.f32 %v74, %v82
    %vm84 = vcmp.eq.f32.partialorder %v74, inf
    %v85 = vsel %vm84, %v74, %v83
    %vm86 = vcmp.eq.f32.partialorder %v74, 0.0
    %v87 = vand.u32 %v74, 2147483648
    %v88 = vsel %vm86, %v87, %v85
    %v89 = vmul.f32 %v23, %v59
    %v90 = vmul.f32 %v24, %v60
    %v91 = vmul.f32 %v81, %v63
    %v92 = vmul.f32 %v88, %v64
    %v93 = vsub.f32 %v89, %v91
    %v94 = vsub.f32 %v90, %v92
    %v95 = vadd.f32 %v93, %v67
    %v96 = vadd.f32 %v94, %v68
    %97 = vst [vmem:[#allocation5] sm:$0xff] %v95
    %98 = vst [vmem:[#allocation5 + $0x8] sm:$0xff] %v96
    %v101 = vcombine.low %v63, %v64
    %v103 = vunpack.c.l.s4 1966171168
    %v104 = vunpack.c.0.s8 %v103
    %v105 = vlaneseq
    %v106 = vshrl.u32 %v105, 7
    %v107 = vsub.s32 %v104, %v106
    %v108 = vrot.slane %v101, %v107
    %v110 = vunpack.c.l.s4 1966171168
    %v111 = vunpack.c.0.s8 %v110
    %v112 = vlaneseq
    %v113 = vshrl.u32 %v112, 7
    %v114 = vsub.s32 %v111, %v113
    %v115 = vrot.slane %v108, %v114
    %v117 = vlaneseq
    %vm118 = vcmp.ge.s32.totalorder %v117, 0
    %vm119 = vcmp.lt.s32.totalorder %v117, 256
    %vm120 = vmand %vm118, %vm119
    %121 = vst.msk [vmem:[%s2] sm:$0x3] %vm120, %v115
    // Predicated region
    $region10: #{qc_norm_correction_train.1} parent=1 // pred_check
      _
    $region11: #{qc_norm_correction_train.1} parent=1 // pred_check_branch
      %123 = sbr.rel (0) target = $region13
    $region12: #{qc_norm_correction_train.1} parent=1 // pred_region
      %s125 = ssub.s32 256, 256
      %126 = vsyncadd [#allocation4], %s125
      %s128 = sshll.u32 [#allocation5], 4
      %s129 = int_to_ptr.vmem [resolvable:$true] %s128
      %131 = dma.vmem_to_hbm [thread:$0]  %s129, 256, %s1, [#allocation4]
    $region13: #{qc_norm_correction_train.1} parent=1 // pred_fallthru
      _
    // Predicated region
    $region14: #{qc_norm_correction_train.1} parent=1 // pred_check
      _
    $region15: #{qc_norm_correction_train.1} parent=1 // pred_check_branch
      %133 = sbr.rel (0) target = $region17
    $region16: #{qc_norm_correction_train.1} parent=1 // pred_region
      _
    $region17: #{qc_norm_correction_train.1} parent=1 // pred_fallthru
      _
    // Predicated region
    $region18: #{qc_norm_correction_train.1} parent=1 // pred_check
      _
    $region19: #{qc_norm_correction_train.1} parent=1 // pred_check_branch
      %135 = sbr.rel (0) target = $region21
    $region20: #{qc_norm_correction_train.1} parent=1 // pred_region
      %136 = dma.done [#allocation4], 256
    $region21: #{qc_norm_correction_train.1} parent=1 // pred_fallthru
      _
    // Predicated region
    $region22: #{qc_norm_correction_train.1} parent=1 // pred_check
      _
    $region23: #{qc_norm_correction_train.1} parent=1 // pred_check_branch
      %138 = sbr.rel (0) target = $region25
    $region24: #{qc_norm_correction_train.1} parent=1 // pred_region
      _
    $region25: #{qc_norm_correction_train.1} parent=1 // pred_fallthru
      _
    %139 = vsyncpa [#allocation3], 1
    %140 = vsyncpa [#allocation4], 1

</llo_original>
